<compile_context>
chip_gen: v7x
topology: tpu7x:2x2x1
jax: 0.10.0
libtpu: 0.0.40
codegen_flags: <defaults>
</compile_context>

<pallas_src>
import functools

import jax
import jax.numpy as jnp
from jax.experimental import pallas as pl
from jax.experimental.pallas import tpu as pltpu


def _round_up(x, m):
    return ((x + m - 1) // m) * m


def mlp_kernel(x_ref, w1_ref, b1_ref, w2_ref, b2_ref, w3_ref, b3_ref,
               w4_ref, b4_ref, o_ref):
    """Fused 4-layer MLP tile: (TM, D) -> (TM, C).

    Weights arrive pre-transposed to (Din, Dout) and pre-cast to bf16; w4 is
    lane-padded to a multiple of 128 out-features, but only the first C
    columns are stored.
    """

    def matmul(h_bf16, w_ref):
        return jnp.dot(h_bf16, w_ref[...], preferred_element_type=jnp.float32)

    h = x_ref[...].astype(jnp.bfloat16)
    h = jnp.maximum(matmul(h, w1_ref) + b1_ref[...], 0.0)          # fc1+relu1
    # dropout1: identity (eval-mode)
    h = jnp.maximum(matmul(h.astype(jnp.bfloat16), w2_ref) + b2_ref[...], 0.0)
    # dropout2: identity (eval-mode)
    h = jnp.maximum(matmul(h.astype(jnp.bfloat16), w3_ref) + b3_ref[...], 0.0)
    y = matmul(h.astype(jnp.bfloat16), w4_ref)                      # (TM, C_pad)
    c = o_ref.shape[-1]
    o_ref[...] = (y[:, :c] + b4_ref[...]).astype(o_ref.dtype)       # fc4


@functools.partial(jax.jit, static_argnames=("block_m",))
def complex_nn_forward(x, w1, b1, w2, b2, w3, b3, w4, b4, *, block_m=1024):
    """x: (B, D) f32.  Weights in PyTorch (out, in) layout, biases (out,)."""
    B, D = x.shape
    C = w4.shape[0]
    H1, H2, H3 = w1.shape[0], w2.shape[0], w3.shape[0]

    # Batch tile: large to amortize grid-step overhead.  No batch padding —
    # grid = cdiv(B, tm); OOB rows of the final partial block are discarded.
    tm = min(block_m, _round_up(B, 8))
    if B >= 512 and -(-B // tm) < 2:
        # v7x megacore: keep >= 2 "parallel" grid steps so both TCs get work.
        tm = _round_up(-(-B // 2), 8)
    grid = (pl.cdiv(B, tm),)

    # One-time wrapper-side weight prep (< 100 KiB total HBM traffic):
    # transpose to (Din, Dout), cast to bf16, lane-pad the last layer's
    # out-features to 128 for a full-width MXU tile.
    C_pad = _round_up(C, 128)
    w4p = jnp.pad(w4, ((0, C_pad - C), (0, 0))) if C_pad != C else w4

    w1t = w1.T.astype(jnp.bfloat16)      # (D,  H1)
    w2t = w2.T.astype(jnp.bfloat16)      # (H1, H2)
    w3t = w3.T.astype(jnp.bfloat16)      # (H2, H3)
    w4t = w4p.T.astype(jnp.bfloat16)     # (H3, C_pad)

    b1_2 = b1.reshape(1, H1).astype(jnp.float32)
    b2_2 = b2.reshape(1, H2).astype(jnp.float32)
    b3_2 = b3.reshape(1, H3).astype(jnp.float32)
    b4_2 = b4.reshape(1, C).astype(jnp.float32)

    out = pl.pallas_call(
        mlp_kernel,
        out_shape=jax.ShapeDtypeStruct((B, C), x.dtype),
        grid_spec=pltpu.PrefetchScalarGridSpec(
            num_scalar_prefetch=0,
            grid=grid,
            in_specs=[
                pl.BlockSpec((tm, D), lambda i: (i, 0)),       # x batch tile
                pl.BlockSpec((D, H1), lambda i: (0, 0)),       # w1^T (resident)
                pl.BlockSpec((1, H1), lambda i: (0, 0)),       # b1
                pl.BlockSpec((H1, H2), lambda i: (0, 0)),      # w2^T
                pl.BlockSpec((1, H2), lambda i: (0, 0)),       # b2
                pl.BlockSpec((H2, H3), lambda i: (0, 0)),      # w3^T
                pl.BlockSpec((1, H3), lambda i: (0, 0)),       # b3
                pl.BlockSpec((H3, C_pad), lambda i: (0, 0)),   # w4^T (lane-padded)
                pl.BlockSpec((1, C), lambda i: (0, 0)),        # b4 (unpadded)
            ],
            out_specs=pl.BlockSpec((tm, C), lambda i: (i, 0)),
        ),
        compiler_params=pltpu.CompilerParams(
            # Batch tiles are independent → megacore-shardable on v7x.
            dimension_semantics=("parallel",),
        ),
    )(x, w1t, b1_2, w2t, b2_2, w3t, b3_2, w4t, b4_2)

    return out


def _init_linear(key, fan_out, fan_in):
    """Mimic nn.Linear default init: U(-1/sqrt(fan_in), 1/sqrt(fan_in))."""
    kw, kb = jax.random.split(key)
    bound = 1.0 / jnp.sqrt(jnp.float32(fan_in))
    w = jax.random.uniform(kw, (fan_out, fan_in), minval=-bound, maxval=bound,
                           dtype=jnp.float32)
    b = jax.random.uniform(kb, (fan_out,), minval=-bound, maxval=bound,
                           dtype=jnp.float32)
    return w, b


def _ref_forward(x, w1, b1, w2, b2, w3, b3, w4, b4):
    dot = lambda a, b: jnp.dot(a, b, precision=jax.lax.Precision.HIGHEST)
    h = jnp.maximum(dot(x, w1.T) + b1, 0.0)
    h = jnp.maximum(dot(h, w2.T) + b2, 0.0)
    h = jnp.maximum(dot(h, w3.T) + b3, 0.0)
    return dot(h, w4.T) + b4


if __name__ == "__main__":
    input_size = 32
    num_classes = 16

    key = jax.random.PRNGKey(0)
    kx1, kx2, k1, k2, k3, k4 = jax.random.split(key, 6)

    w1, b1 = _init_linear(k1, 128, input_size)
    w2, b2 = _init_linear(k2, 64, 128)
    w3, b3 = _init_linear(k3, 32, 64)
    w4, b4 = _init_linear(k4, num_classes, 32)

    # TODO(synk): training-mode dropout (stochastic masking) not implemented;
    # forward matches the module in eval() mode (dropout = identity).

    # Case 1: tiny batch, single grid step.
    x_small = jax.random.normal(kx1, (8, input_size), dtype=jnp.float32)
    out_small = jax.block_until_ready(
        complex_nn_forward(x_small, w1, b1, w2, b2, w3, b3, w4, b4))
    ref_small = _ref_forward(x_small, w1, b1, w2, b2, w3, b3, w4, b4)
    assert out_small.shape == (8, num_classes)
    assert jnp.allclose(out_small, ref_small, atol=3e-2, rtol=3e-2), (
        float(jnp.max(jnp.abs(out_small - ref_small))))

    # Case 2: batch not a multiple of the tile (multi-step grid, partial
    # final block — verifies OOB rows are discarded correctly).
    x_big = jax.random.normal(kx2, (300, input_size), dtype=jnp.float32)
    out_big = jax.block_until_ready(
        complex_nn_forward(x_big, w1, b1, w2, b2, w3, b3, w4, b4, block_m=128))
    ref_big = _ref_forward(x_big, w1, b1, w2, b2, w3, b3, w4, b4)
    assert out_big.shape == (300, num_classes)
    assert jnp.allclose(out_big, ref_big, atol=3e-2, rtol=3e-2), (
        float(jnp.max(jnp.abs(out_big - ref_big))))

    print("KERNEL_OK")
</pallas_src>

<mosaic_0001>
module attributes {stable_mosaic.version = 11 : i64} {
  func.func @mlp_kernel(%arg0: i32, %arg1: memref<8x32xf32, #tpu.memory_space<vmem>>, %arg2: memref<32x128xbf16, #tpu.memory_space<vmem>>, %arg3: memref<1x128xf32, #tpu.memory_space<vmem>>, %arg4: memref<128x64xbf16, #tpu.memory_space<vmem>>, %arg5: memref<1x64xf32, #tpu.memory_space<vmem>>, %arg6: memref<64x32xbf16, #tpu.memory_space<vmem>>, %arg7: memref<1x32xf32, #tpu.memory_space<vmem>>, %arg8: memref<32x128xbf16, #tpu.memory_space<vmem>>, %arg9: memref<1x16xf32, #tpu.memory_space<vmem>>, %arg10: memref<8x16xf32, #tpu.memory_space<vmem>>) attributes {dimension_semantics = [#tpu.dimension_semantics<parallel>], iteration_bounds = array<i64: 1>, scalar_prefetch = 0 : i64, scratch_operands = 0 : i64, tpu.core_type = #tpu.core_type<tc>, window_params = [{transform_indices = @transform_0, window_bounds = array<i64: 8, 32>}, {pipeline_mode = #tpu.pipeline_mode<synchronous>, transform_indices = @transform_1, window_bounds = array<i64: 32, 128>}, {pipeline_mode = #tpu.pipeline_mode<synchronous>, transform_indices = @transform_2, window_bounds = array<i64: 1, 128>}, {pipeline_mode = #tpu.pipeline_mode<synchronous>, transform_indices = @transform_3, window_bounds = array<i64: 128, 64>}, {pipeline_mode = #tpu.pipeline_mode<synchronous>, transform_indices = @transform_4, window_bounds = array<i64: 1, 64>}, {pipeline_mode = #tpu.pipeline_mode<synchronous>, transform_indices = @transform_5, window_bounds = array<i64: 64, 32>}, {pipeline_mode = #tpu.pipeline_mode<synchronous>, transform_indices = @transform_6, window_bounds = array<i64: 1, 32>}, {pipeline_mode = #tpu.pipeline_mode<synchronous>, transform_indices = @transform_7, window_bounds = array<i64: 32, 128>}, {pipeline_mode = #tpu.pipeline_mode<synchronous>, transform_indices = @transform_8, window_bounds = array<i64: 1, 16>}, {transform_indices = @transform_9, window_bounds = array<i64: 8, 16>}]} {
    %c0 = arith.constant 0 : index
    %c0_0 = arith.constant 0 : index
    %0 = vector.load %arg1[%c0, %c0_0] : memref<8x32xf32, #tpu.memory_space<vmem>>, vector<8x32xf32>
    %1 = arith.truncf %0 : vector<8x32xf32> to vector<8x32xbf16>
    %c0_1 = arith.constant 0 : index
    %c0_2 = arith.constant 0 : index
    %2 = vector.load %arg2[%c0_1, %c0_2] : memref<32x128xbf16, #tpu.memory_space<vmem>>, vector<32x128xbf16>
    %cst = arith.constant dense<0.000000e+00> : vector<8x128xf32>
    %3 = tpu.matmul %1, %2, %cst {dimension_numbers = #tpu.dot_dimension_numbers<[1], [0], [0], [1], [0, 0, 1, 1], [], []>} : vector<8x32xbf16>, vector<32x128xbf16>, vector<8x128xf32> -> vector<8x128xf32>
    %c0_3 = arith.constant 0 : index
    %c0_4 = arith.constant 0 : index
    %4 = vector.load %arg3[%c0_3, %c0_4] : memref<1x128xf32, #tpu.memory_space<vmem>>, vector<1x128xf32>
    %5 = vector.broadcast %4 : vector<1x128xf32> to vector<8x128xf32>
    %6 = arith.addf %3, %5 : vector<8x128xf32>
    %cst_5 = arith.constant 0.000000e+00 : f32
    %7 = vector.broadcast %cst_5 : f32 to vector<8x128xf32>
    %8 = arith.maximumf %6, %7 : vector<8x128xf32>
    %9 = arith.truncf %8 : vector<8x128xf32> to vector<8x128xbf16>
    %c0_6 = arith.constant 0 : index
    %c0_7 = arith.constant 0 : index
    %10 = vector.load %arg4[%c0_6, %c0_7] : memref<128x64xbf16, #tpu.memory_space<vmem>>, vector<128x64xbf16>
    %cst_8 = arith.constant dense<0.000000e+00> : vector<8x64xf32>
    %11 = tpu.matmul %9, %10, %cst_8 {dimension_numbers = #tpu.dot_dimension_numbers<[1], [0], [0], [1], [0, 0, 1, 1], [], []>} : vector<8x128xbf16>, vector<128x64xbf16>, vector<8x64xf32> -> vector<8x64xf32>
    %c0_9 = arith.constant 0 : index
    %c0_10 = arith.constant 0 : index
    %12 = vector.load %arg5[%c0_9, %c0_10] : memref<1x64xf32, #tpu.memory_space<vmem>>, vector<1x64xf32>
    %13 = vector.broadcast %12 : vector<1x64xf32> to vector<8x64xf32>
    %14 = arith.addf %11, %13 : vector<8x64xf32>
    %cst_11 = arith.constant 0.000000e+00 : f32
    %15 = vector.broadcast %cst_11 : f32 to vector<8x64xf32>
    %16 = arith.maximumf %14, %15 : vector<8x64xf32>
    %17 = arith.truncf %16 : vector<8x64xf32> to vector<8x64xbf16>
    %c0_12 = arith.constant 0 : index
    %c0_13 = arith.constant 0 : index
    %18 = vector.load %arg6[%c0_12, %c0_13] : memref<64x32xbf16, #tpu.memory_space<vmem>>, vector<64x32xbf16>
    %cst_14 = arith.constant dense<0.000000e+00> : vector<8x32xf32>
    %19 = tpu.matmul %17, %18, %cst_14 {dimension_numbers = #tpu.dot_dimension_numbers<[1], [0], [0], [1], [0, 0, 1, 1], [], []>} : vector<8x64xbf16>, vector<64x32xbf16>, vector<8x32xf32> -> vector<8x32xf32>
    %c0_15 = arith.constant 0 : index
    %c0_16 = arith.constant 0 : index
    %20 = vector.load %arg7[%c0_15, %c0_16] : memref<1x32xf32, #tpu.memory_space<vmem>>, vector<1x32xf32>
    %21 = vector.broadcast %20 : vector<1x32xf32> to vector<8x32xf32>
    %22 = arith.addf %19, %21 : vector<8x32xf32>
    %cst_17 = arith.constant 0.000000e+00 : f32
    %23 = vector.broadcast %cst_17 : f32 to vector<8x32xf32>
    %24 = arith.maximumf %22, %23 : vector<8x32xf32>
    %25 = arith.truncf %24 : vector<8x32xf32> to vector<8x32xbf16>
    %c0_18 = arith.constant 0 : index
    %c0_19 = arith.constant 0 : index
    %26 = vector.load %arg8[%c0_18, %c0_19] : memref<32x128xbf16, #tpu.memory_space<vmem>>, vector<32x128xbf16>
    %cst_20 = arith.constant dense<0.000000e+00> : vector<8x128xf32>
    %27 = tpu.matmul %25, %26, %cst_20 {dimension_numbers = #tpu.dot_dimension_numbers<[1], [0], [0], [1], [0, 0, 1, 1], [], []>} : vector<8x32xbf16>, vector<32x128xbf16>, vector<8x128xf32> -> vector<8x128xf32>
    %28 = vector.extract_strided_slice %27 {offsets = [0, 0], sizes = [8, 16], strides = [1, 1]} : vector<8x128xf32> to vector<8x16xf32>
    %c0_21 = arith.constant 0 : index
    %c0_22 = arith.constant 0 : index
    %29 = vector.load %arg9[%c0_21, %c0_22] : memref<1x16xf32, #tpu.memory_space<vmem>>, vector<1x16xf32>
    %30 = vector.broadcast %29 : vector<1x16xf32> to vector<8x16xf32>
    %31 = arith.addf %28, %30 : vector<8x16xf32>
    %c0_23 = arith.constant 0 : index
    %c0_24 = arith.constant 0 : index
    %32 = vector.load %arg10[%c0_23, %c0_24] : memref<8x16xf32, #tpu.memory_space<vmem>>, vector<8x16xf32>
    tpu.vector_store %arg10[%c0_23, %c0_24], %31 {strides = array<i32>} : memref<8x16xf32, #tpu.memory_space<vmem>>, vector<8x16xf32>,
    return
  }
  func.func @transform_0(%arg0: i32) -> (i32, i32) {
    %c0_i32 = arith.constant 0 : i32
    %c0_i32_0 = arith.constant 0 : i32
    return %arg0, %c0_i32 : i32, i32
  }
  func.func @transform_1(%arg0: i32) -> (i32, i32) {
    %c0_i32 = arith.constant 0 : i32
    %c0_i32_0 = arith.constant 0 : i32
    %c0_i32_1 = arith.constant 0 : i32
    return %c0_i32, %c0_i32_0 : i32, i32
  }
  func.func @transform_2(%arg0: i32) -> (i32, i32) {
    %c0_i32 = arith.constant 0 : i32
    %c0_i32_0 = arith.constant 0 : i32
    %c0_i32_1 = arith.constant 0 : i32
    return %c0_i32, %c0_i32_0 : i32, i32
  }
  func.func @transform_3(%arg0: i32) -> (i32, i32) {
    %c0_i32 = arith.constant 0 : i32
    %c0_i32_0 = arith.constant 0 : i32
    %c0_i32_1 = arith.constant 0 : i32
    return %c0_i32, %c0_i32_0 : i32, i32
  }
  func.func @transform_4(%arg0: i32) -> (i32, i32) {
    %c0_i32 = arith.constant 0 : i32
    %c0_i32_0 = arith.constant 0 : i32
    %c0_i32_1 = arith.constant 0 : i32
    return %c0_i32, %c0_i32_0 : i32, i32
  }
  func.func @transform_5(%arg0: i32) -> (i32, i32) {
    %c0_i32 = arith.constant 0 : i32
    %c0_i32_0 = arith.constant 0 : i32
    %c0_i32_1 = arith.constant 0 : i32
    return %c0_i32, %c0_i32_0 : i32, i32
  }
  func.func @transform_6(%arg0: i32) -> (i32, i32) {
    %c0_i32 = arith.constant 0 : i32
    %c0_i32_0 = arith.constant 0 : i32
    %c0_i32_1 = arith.constant 0 : i32
    return %c0_i32, %c0_i32_0 : i32, i32
  }
  func.func @transform_7(%arg0: i32) -> (i32, i32) {
    %c0_i32 = arith.constant 0 : i32
    %c0_i32_0 = arith.constant 0 : i32
    %c0_i32_1 = arith.constant 0 : i32
    return %c0_i32, %c0_i32_0 : i32, i32
  }
  func.func @transform_8(%arg0: i32) -> (i32, i32) {
    %c0_i32 = arith.constant 0 : i32
    %c0_i32_0 = arith.constant 0 : i32
    %c0_i32_1 = arith.constant 0 : i32
    return %c0_i32, %c0_i32_0 : i32, i32
  }
  func.func @transform_9(%arg0: i32) -> (i32, i32) {
    %c0_i32 = arith.constant 0 : i32
    %c0_i32_0 = arith.constant 0 : i32
    return %arg0, %c0_i32 : i32, i32
  }
}

</mosaic_0001>

<llo_original>
// kernel: complex_nn_forward.1
$region0: #{complex_nn_forward.1}
  #allocation0 [shape = 'u32[]', space=smem, size = 0x4, offset = 0x4, fixed_abs, tag = 'smem constant byte address 0x4 - core index']
  #allocation1 [shape = 'u32[144,128]{1,0:T(1,128)}', space=vmem, size = 0x12000, scoped, tag = 'internal scratch']
  %s0 = inlined_call_operand.vmem [shape: f32[8,32], index: 0, kind: input, shape index: {}]
  %s1 = inlined_call_operand.vmem [shape: bf16[32,128], index: 1, kind: input, shape index: {}]
  %s2 = inlined_call_operand.vmem [shape: f32[1,128], index: 2, kind: input, shape index: {}]
  %s3 = inlined_call_operand.vmem [shape: bf16[128,64], index: 3, kind: input, shape index: {}]
  %s4 = inlined_call_operand.vmem [shape: f32[1,64], index: 4, kind: input, shape index: {}]
  %s5 = inlined_call_operand.vmem [shape: bf16[64,32], index: 5, kind: input, shape index: {}]
  %s6 = inlined_call_operand.vmem [shape: f32[1,32], index: 6, kind: input, shape index: {}]
  %s7 = inlined_call_operand.vmem [shape: bf16[32,128], index: 7, kind: input, shape index: {}]
  %s8 = inlined_call_operand.vmem [shape: f32[1,16], index: 8, kind: input, shape index: {}]
  %s9 = inlined_call_operand.hbm [shape: f32[8,16], index: 9, kind: output, shape index: {}]
  %s10 = sld [smem:[#allocation0]]
  $region46: #{complex_nn_forward.1} parent=0
    _
  %s12 = ssub.s32 1, %s10
  %s13 = scalar_select 0, %s12, %s10
  $region1: #{complex_nn_forward.1} parent=0
    #allocation2 [shape = 'u8[4096]{0}', space=vmem, size = 0x1000, scoped, tag = 'output window, operand 0, single buffered']
    #allocation3 [shape = 's32[1]{0}', space=sflag, size = 0x4, scoped, tag = 'scoped memory for complex_nn_forward.1']
    %14 = vsyncpa [#allocation3], 0
    // Predicated region
    $region2: #{complex_nn_forward.1} parent=1 // pred_check
      _
    $region3: #{complex_nn_forward.1} parent=1 // pred_check_branch
      %16 = sbr.rel (0) target = $region5
    $region4: #{complex_nn_forward.1} parent=1 // pred_region
      _
    $region5: #{complex_nn_forward.1} parent=1 // pred_fallthru
      _
    // Predicated region
    $region6: #{complex_nn_forward.1} parent=1 // pred_check
      _
    $region7: #{complex_nn_forward.1} parent=1 // pred_check_branch
      %18 = sbr.rel (0) target = $region9
    $region8: #{complex_nn_forward.1} parent=1 // pred_region
      _
    $region9: #{complex_nn_forward.1} parent=1 // pred_fallthru
      _
    // Predicated region
    $region10: #{complex_nn_forward.1} parent=1 // pred_check
      _
    $region11: #{complex_nn_forward.1} parent=1 // pred_check_branch
      %20 = sbr.rel (0) target = $region13
    $region12: #{complex_nn_forward.1} parent=1 // pred_region
      _
    $region13: #{complex_nn_forward.1} parent=1 // pred_fallthru
      _
    // Predicated region
    $region14: #{complex_nn_forward.1} parent=1 // pred_check
      _
    $region15: #{complex_nn_forward.1} parent=1 // pred_check_branch
      %22 = sbr.rel (0) target = $region17
    $region16: #{complex_nn_forward.1} parent=1 // pred_region
      _
    $region17: #{complex_nn_forward.1} parent=1 // pred_fallthru
      _
    // Predicated region
    $region18: #{complex_nn_forward.1} parent=1 // pred_check
      _
    $region19: #{complex_nn_forward.1} parent=1 // pred_check_branch
      %24 = sbr.rel (0) target = $region21
    $region20: #{complex_nn_forward.1} parent=1 // pred_region
      _
    $region21: #{complex_nn_forward.1} parent=1 // pred_fallthru
      _
    // Predicated region
    $region22: #{complex_nn_forward.1} parent=1 // pred_check
      _
    $region23: #{complex_nn_forward.1} parent=1 // pred_check_branch
      %26 = sbr.rel (0) target = $region25
    $region24: #{complex_nn_forward.1} parent=1 // pred_region
      _
    $region25: #{complex_nn_forward.1} parent=1 // pred_fallthru
      _
    // Predicated region
    $region26: #{complex_nn_forward.1} parent=1 // pred_check
      _
    $region27: #{complex_nn_forward.1} parent=1 // pred_check_branch
      %28 = sbr.rel (0) target = $region29
    $region28: #{complex_nn_forward.1} parent=1 // pred_region
      _
    $region29: #{complex_nn_forward.1} parent=1 // pred_fallthru
      _
    // Predicated region
    $region30: #{complex_nn_forward.1} parent=1 // pred_check
      _
    $region31: #{complex_nn_forward.1} parent=1 // pred_check_branch
      %30 = sbr.rel (0) target = $region33
    $region32: #{complex_nn_forward.1} parent=1 // pred_region
      _
    $region33: #{complex_nn_forward.1} parent=1 // pred_fallthru
      _
    // Predicated region
    $region34: #{complex_nn_forward.1} parent=1 // pred_check
      _
    $region35: #{complex_nn_forward.1} parent=1 // pred_check_branch
      %32 = sbr.rel (0) target = $region37
    $region36: #{complex_nn_forward.1} parent=1 // pred_region
      _
    $region37: #{complex_nn_forward.1} parent=1 // pred_fallthru
      _
    %v34 = vld [vmem:[%s0] sm:$0xff]
    %v35 = vpack.c.bf16 %v34, %v34
    %v36 = vld [vmem:[%s1] sm:$0xf]
    %v37 = vld [vmem:[%s1 + $0x4] sm:$0xf]
    %v38 = vld [vmem:[%s1 + $0x8] sm:$0xf]
    %v39 = vld [vmem:[%s1 + $0xc] sm:$0xf]
    %v40 = vld [vmem:[%s2] sm:$0x1]
    %v42 = vlaneseq
    %v43 = vshrl.u32 %v42, 7
    %v44 = vsub.s32 0, %v43
    %v45 = vrot.slane %v40, %v44
    %v51 = vunpack.c.l.b16 %v36
    %v52 = vunpack.c.l.b16 %v37
    %v53 = vunpack.c.l.b16 %v38
    %v54 = vunpack.c.l.b16 %v39
    %v55 = vpack.c.b16 %v52, %v51
    %v56 = vpack.c.b16 %v54, %v53
    %vm59 = vcmask 261120
    %v61 = vsel %vm59, %v35, 0
    %63 = vmatprep.subr.bf16.mxu0 0
    %64 = vmatpush1.bf16.msra.mxu0 %v55
    %65 = vmatprep.subr.bf16.mxu0 0
    %66 = vmatpush1.bf16.msra.mxu0 %v56
    %67 = vmatprep.subr.bf16.mxu0 0
    %68 = vmatpush1.bf16.msra.mxu0 0
    %69 = vmatprep.subr.bf16.mxu0 0
    %70 = vmatpush1.bf16.msra.mxu0 0
    %71 = vmatprep.subr.bf16.mxu0 0
    %72 = vmatpush1.bf16.msra.mxu0 0
    %73 = vmatprep.subr.bf16.mxu0 0
    %74 = vmatpush1.bf16.msra.mxu0 0
    %75 = vmatprep.subr.bf16.mxu0 0
    %76 = vmatpush1.bf16.msra.mxu0 0
    %77 = vmatprep.subr.bf16.mxu0 0
    %78 = vmatpush1.bf16.msra.mxu0 0
    %79 = vmatprep.subr.bf16.mxu0 0
    %80 = vmatpush1.bf16.msra.mxu0 0
    %81 = vmatprep.subr.bf16.mxu0 0
    %82 = vmatpush1.bf16.msra.mxu0 0
    %83 = vmatprep.subr.bf16.mxu0 0
    %84 = vmatpush1.bf16.msra.mxu0 0
    %85 = vmatprep.subr.bf16.mxu0 0
    %86 = vmatpush1.bf16.msra.mxu0 0
    %87 = vmatprep.subr.bf16.mxu0 0
    %88 = vmatpush1.bf16.msra.mxu0 0
    %89 = vmatprep.subr.bf16.mxu0 0
    %90 = vmatpush1.bf16.msra.mxu0 0
    %91 = vmatprep.subr.bf16.mxu0 0
    %92 = vmatpush1.bf16.msra.mxu0 0
    %93 = vmatprep.subr.bf16.mxu0 0
    %94 = vmatpush1.bf16.msra.mxu0 0
    %95 = vmatprep.mubr.bf16.mxu0 0
    %96 = vmatmul.mubr.bf16.gmra.mrb[0].mxu0 %v61
    %v97 = vpop.f32.mrb[0].mxu0
    %v98 = vadd.f32 %v45, %v97
    %v99 = vpop.f32.mrb[0].mxu0
    %v100 = vpop.f32.mrb[0].mxu0
    %v101 = vpop.f32.mrb[0].mxu0
    %102 = vdwg.mxu0
    %v103 = vmax.f32 %v98, 0.0
    %v104 = vpack.c.bf16 %v103, %v103
    %v105 = vld [vmem:[%s3] sm:$0xf]
    %v106 = vld [vmem:[%s3 + $0x4] sm:$0xf]
    %v107 = vld [vmem:[%s3 + $0x8] sm:$0xf]
    %v108 = vld [vmem:[%s3 + $0xc] sm:$0xf]
    %v109 = vld [vmem:[%s3 + $0x10] sm:$0xf]
    %v110 = vld [vmem:[%s3 + $0x14] sm:$0xf]
    %v111 = vld [vmem:[%s3 + $0x18] sm:$0xf]
    %v112 = vld [vmem:[%s3 + $0x1c] sm:$0xf]
    %v113 = vld [vmem:[%s3 + $0x20] sm:$0xf]
    %v114 = vld [vmem:[%s3 + $0x24] sm:$0xf]
    %v115 = vld [vmem:[%s3 + $0x28] sm:$0xf]
    %v116 = vld [vmem:[%s3 + $0x2c] sm:$0xf]
    %v117 = vld [vmem:[%s3 + $0x30] sm:$0xf]
    %v118 = vld [vmem:[%s3 + $0x34] sm:$0xf]
    %v119 = vld [vmem:[%s3 + $0x38] sm:$0xf]
    %v120 = vld [vmem:[%s3 + $0x3c] sm:$0xf]
    %v121 = vld [vmem:[%s4] sm:$0x1]
    %v123 = vlaneseq
    %v124 = vshrl.u32 %v123, 7
    %v125 = vsub.s32 0, %v124
    %v126 = vrot.slane %v121, %v125
    %v144 = vunpack.c.l.b16 %v105
    %v145 = vunpack.c.l.b16 %v106
    %v146 = vunpack.c.l.b16 %v107
    %v147 = vunpack.c.l.b16 %v108
    %v148 = vunpack.c.l.b16 %v109
    %v149 = vunpack.c.l.b16 %v110
    %v150 = vunpack.c.l.b16 %v111
    %v151 = vunpack.c.l.b16 %v112
    %v152 = vunpack.c.l.b16 %v113
    %v153 = vunpack.c.l.b16 %v114
    %v154 = vunpack.c.l.b16 %v115
    %v155 = vunpack.c.l.b16 %v116
    %v156 = vunpack.c.l.b16 %v117
    %v157 = vunpack.c.l.b16 %v118
    %v158 = vunpack.c.l.b16 %v119
    %v159 = vunpack.c.l.b16 %v120
    %v160 = vpack.c.b16 %v145, %v144
    %v161 = vpack.c.b16 %v147, %v146
    %v162 = vpack.c.b16 %v149, %v148
    %v163 = vpack.c.b16 %v151, %v150
    %v164 = vpack.c.b16 %v153, %v152
    %v165 = vpack.c.b16 %v155, %v154
    %v166 = vpack.c.b16 %v157, %v156
    %v167 = vpack.c.b16 %v159, %v158
    %176 = vmatprep.subr.bf16.mxu0 0
    %177 = vmatpush1.bf16.msra.mxu0 %v160
    %178 = vmatprep.subr.bf16.mxu0 0
    %179 = vmatpush1.bf16.msra.mxu0 %v161
    %180 = vmatprep.subr.bf16.mxu0 0
    %181 = vmatpush1.bf16.msra.mxu0 %v162
    %182 = vmatprep.subr.bf16.mxu0 0
    %183 = vmatpush1.bf16.msra.mxu0 %v163
    %184 = vmatprep.subr.bf16.mxu0 0
    %185 = vmatpush1.bf16.msra.mxu0 %v164
    %186 = vmatprep.subr.bf16.mxu0 0
    %187 = vmatpush1.bf16.msra.mxu0 %v165
    %188 = vmatprep.subr.bf16.mxu0 0
    %189 = vmatpush1.bf16.msra.mxu0 %v166
    %190 = vmatprep.subr.bf16.mxu0 0
    %191 = vmatpush1.bf16.msra.mxu0 %v167
    %192 = vmatprep.subr.bf16.mxu0 0
    %193 = vmatpush1.bf16.msra.mxu0 0
    %194 = vmatprep.subr.bf16.mxu0 0
    %195 = vmatpush1.bf16.msra.mxu0 0
    %196 = vmatprep.subr.bf16.mxu0 0
    %197 = vmatpush1.bf16.msra.mxu0 0
    %198 = vmatprep.subr.bf16.mxu0 0
    %199 = vmatpush1.bf16.msra.mxu0 0
    %200 = vmatprep.subr.bf16.mxu0 0
    %201 = vmatpush1.bf16.msra.mxu0 0
    %202 = vmatprep.subr.bf16.mxu0 0
    %203 = vmatpush1.bf16.msra.mxu0 0
    %204 = vmatprep.subr.bf16.mxu0 0
    %205 = vmatpush1.bf16.msra.mxu0 0
    %206 = vmatprep.subr.bf16.mxu0 0
    %207 = vmatpush1.bf16.msra.mxu0 0
    %208 = vmatprep.mubr.bf16.mxu0 0
    %209 = vmatmul.mubr.bf16.gmra.mrb[0].mxu0 %v104
    %v210 = vpop.f32.mrb[0].mxu0
    %v211 = vadd.f32 %v126, %v210
    %v212 = vpop.f32.mrb[0].mxu0
    %v213 = vpop.f32.mrb[0].mxu0
    %v214 = vpop.f32.mrb[0].mxu0
    %215 = vdwg.mxu0
    %v216 = vmax.f32 %v211, 0.0
    %v217 = vpack.c.bf16 %v216, %v216
    %v218 = vld [vmem:[%s5] sm:$0xf]
    %v219 = vld [vmem:[%s5 + $0x4] sm:$0xf]
    %v220 = vld [vmem:[%s5 + $0x8] sm:$0xf]
    %v221 = vld [vmem:[%s5 + $0xc] sm:$0xf]
    %v222 = vld [vmem:[%s5 + $0x10] sm:$0xf]
    %v223 = vld [vmem:[%s5 + $0x14] sm:$0xf]
    %v224 = vld [vmem:[%s5 + $0x18] sm:$0xf]
    %v225 = vld [vmem:[%s5 + $0x1c] sm:$0xf]
    %v226 = vld [vmem:[%s6] sm:$0x1]
    %v228 = vlaneseq
    %v229 = vshrl.u32 %v228, 7
    %v230 = vsub.s32 0, %v229
    %v231 = vrot.slane %v226, %v230
    %v241 = vunpack.c.l.b16 %v218
    %v242 = vunpack.c.l.b16 %v219
    %v243 = vunpack.c.l.b16 %v220
    %v244 = vunpack.c.l.b16 %v221
    %v245 = vunpack.c.l.b16 %v222
    %v246 = vunpack.c.l.b16 %v223
    %v247 = vunpack.c.l.b16 %v224
    %v248 = vunpack.c.l.b16 %v225
    %v249 = vpack.c.b16 %v242, %v241
    %v250 = vpack.c.b16 %v244, %v243
    %v251 = vpack.c.b16 %v246, %v245
    %v252 = vpack.c.b16 %v248, %v247
    %vm257 = vcmask 523264
    %v259 = vsel %vm257, %v217, 0
    %261 = vmatprep.subr.bf16.mxu0 0
    %262 = vmatpush1.bf16.msra.mxu0 %v249
    %263 = vmatprep.subr.bf16.mxu0 0
    %264 = vmatpush1.bf16.msra.mxu0 %v250
    %265 = vmatprep.subr.bf16.mxu0 0
    %266 = vmatpush1.bf16.msra.mxu0 %v251
    %267 = vmatprep.subr.bf16.mxu0 0
    %268 = vmatpush1.bf16.msra.mxu0 %v252
    %269 = vmatprep.subr.bf16.mxu0 0
    %270 = vmatpush1.bf16.msra.mxu0 0
    %271 = vmatprep.subr.bf16.mxu0 0
    %272 = vmatpush1.bf16.msra.mxu0 0
    %273 = vmatprep.subr.bf16.mxu0 0
    %274 = vmatpush1.bf16.msra.mxu0 0
    %275 = vmatprep.subr.bf16.mxu0 0
    %276 = vmatpush1.bf16.msra.mxu0 0
    %277 = vmatprep.subr.bf16.mxu0 0
    %278 = vmatpush1.bf16.msra.mxu0 0
    %279 = vmatprep.subr.bf16.mxu0 0
    %280 = vmatpush1.bf16.msra.mxu0 0
    %281 = vmatprep.subr.bf16.mxu0 0
    %282 = vmatpush1.bf16.msra.mxu0 0
    %283 = vmatprep.subr.bf16.mxu0 0
    %284 = vmatpush1.bf16.msra.mxu0 0
    %285 = vmatprep.subr.bf16.mxu0 0
    %286 = vmatpush1.bf16.msra.mxu0 0
    %287 = vmatprep.subr.bf16.mxu0 0
    %288 = vmatpush1.bf16.msra.mxu0 0
    %289 = vmatprep.subr.bf16.mxu0 0
    %290 = vmatpush1.bf16.msra.mxu0 0
    %291 = vmatprep.subr.bf16.mxu0 0
    %292 = vmatpush1.bf16.msra.mxu0 0
    %293 = vmatprep.mubr.bf16.mxu0 0
    %294 = vmatmul.mubr.bf16.gmra.mrb[0].mxu0 %v259
    %v295 = vpop.f32.mrb[0].mxu0
    %v296 = vadd.f32 %v231, %v295
    %v297 = vpop.f32.mrb[0].mxu0
    %v298 = vpop.f32.mrb[0].mxu0
    %v299 = vpop.f32.mrb[0].mxu0
    %300 = vdwg.mxu0
    %v301 = vmax.f32 %v296, 0.0
    %v302 = vpack.c.bf16 %v301, %v301
    %v303 = vld [vmem:[%s7] sm:$0xf]
    %v304 = vld [vmem:[%s7 + $0x4] sm:$0xf]
    %v305 = vld [vmem:[%s7 + $0x8] sm:$0xf]
    %v306 = vld [vmem:[%s7 + $0xc] sm:$0xf]
    %v311 = vunpack.c.l.b16 %v303
    %v312 = vunpack.c.l.b16 %v304
    %v313 = vunpack.c.l.b16 %v305
    %v314 = vunpack.c.l.b16 %v306
    %v315 = vpack.c.b16 %v312, %v311
    %v316 = vpack.c.b16 %v314, %v313
    %v320 = vsel %vm59, %v302, 0
    %322 = vmatprep.subr.bf16.mxu0 0
    %323 = vmatpush1.bf16.msra.mxu0 %v315
    %324 = vmatprep.subr.bf16.mxu0 0
    %325 = vmatpush1.bf16.msra.mxu0 %v316
    %326 = vmatprep.subr.bf16.mxu0 0
    %327 = vmatpush1.bf16.msra.mxu0 0
    %328 = vmatprep.subr.bf16.mxu0 0
    %329 = vmatpush1.bf16.msra.mxu0 0
    %330 = vmatprep.subr.bf16.mxu0 0
    %331 = vmatpush1.bf16.msra.mxu0 0
    %332 = vmatprep.subr.bf16.mxu0 0
    %333 = vmatpush1.bf16.msra.mxu0 0
    %334 = vmatprep.subr.bf16.mxu0 0
    %335 = vmatpush1.bf16.msra.mxu0 0
    %336 = vmatprep.subr.bf16.mxu0 0
    %337 = vmatpush1.bf16.msra.mxu0 0
    %338 = vmatprep.subr.bf16.mxu0 0
    %339 = vmatpush1.bf16.msra.mxu0 0
    %340 = vmatprep.subr.bf16.mxu0 0
    %341 = vmatpush1.bf16.msra.mxu0 0
    %342 = vmatprep.subr.bf16.mxu0 0
    %343 = vmatpush1.bf16.msra.mxu0 0
    %344 = vmatprep.subr.bf16.mxu0 0
    %345 = vmatpush1.bf16.msra.mxu0 0
    %346 = vmatprep.subr.bf16.mxu0 0
    %347 = vmatpush1.bf16.msra.mxu0 0
    %348 = vmatprep.subr.bf16.mxu0 0
    %349 = vmatpush1.bf16.msra.mxu0 0
    %350 = vmatprep.subr.bf16.mxu0 0
    %351 = vmatpush1.bf16.msra.mxu0 0
    %352 = vmatprep.subr.bf16.mxu0 0
    %353 = vmatpush1.bf16.msra.mxu0 0
    %354 = vmatprep.mubr.bf16.mxu0 0
    %355 = vmatmul.mubr.bf16.gmra.mrb[0].mxu0 %v320
    %v356 = vpop.f32.mrb[0].mxu0
    %v357 = vadd.f32 0.0, %v356
    %v358 = vpop.f32.mrb[0].mxu0
    %v359 = vpop.f32.mrb[0].mxu0
    %v360 = vpop.f32.mrb[0].mxu0
    %361 = vdwg.mxu0
    %v362 = vld [vmem:[%s8] sm:$0x1]
    %v364 = vlaneseq
    %v365 = vshrl.u32 %v364, 7
    %v366 = vsub.s32 0, %v365
    %v367 = vrot.slane %v362, %v366
    %v369 = vadd.f32 %v357, %v367
    %vm370 = vcmask 130048
    %371 = vst.msk [vmem:[#allocation2] sm:$0xff] %vm370, %v369
    // Predicated region
    $region38: #{complex_nn_forward.1} parent=1 // pred_check
      _
    $region39: #{complex_nn_forward.1} parent=1 // pred_check_branch
      %373 = sbr.rel (0) target = $region41
    $region40: #{complex_nn_forward.1} parent=1 // pred_region
      %s375 = ssub.s32 128, 128
      %376 = vsyncadd [#allocation3], %s375
      %s378 = sshll.u32 [#allocation2], 4
      %s379 = int_to_ptr.vmem [resolvable:$true] %s378
      %381 = dma.vmem_to_hbm [thread:$0]  %s379, 128, %s9, [#allocation3]
    $region41: #{complex_nn_forward.1} parent=1 // pred_fallthru
      _
    // Predicated region
    $region42: #{complex_nn_forward.1} parent=1 // pred_check
      _
    $region43: #{complex_nn_forward.1} parent=1 // pred_check_branch
      %383 = sbr.rel (0) target = $region45
    $region44: #{complex_nn_forward.1} parent=1 // pred_region
      %384 = dma.done [#allocation3], 128
    $region45: #{complex_nn_forward.1} parent=1 // pred_fallthru
      _
    %385 = vsyncpa [#allocation3], 1

</llo_original>
